<compile_context>
chip_gen: v7x
topology: tpu7x:2x2x1
jax: 0.10.0
libtpu: 0.0.40
codegen_flags: <defaults>
</compile_context>

<pallas_src>
import functools

import jax
import jax.numpy as jnp
from jax.experimental import pallas as pl
from jax.experimental.pallas import tpu as pltpu


def actor_kernel(x_ref, w1_ref, w2_ref, wh_ref, b_ref, out_ref, *, hidden, ac_dim):
    """One batch tile of the fused Actor MLP.

    x_ref   : [TB, ob_dim]
    w1_ref  : [ob_dim, hidden]
    w2_ref  : [hidden, hidden]
    wh_ref  : [hidden, 2*ac_dim]          (Wm | Ws fused head weights)
    b_ref   : [3, max(hidden, 2*ac_dim)]  rows: b1, b2, (bm|bs)
    out_ref : [TB, 2*ac_dim]              (mean | std fused, activations applied)
    """
    x = x_ref[...]
    b1 = b_ref[0:1, :hidden]
    b2 = b_ref[1:2, :hidden]
    bh = b_ref[2:3, :2 * ac_dim]

    h1 = jnp.maximum(
        jnp.dot(x, w1_ref[...], preferred_element_type=jnp.float32) + b1, 0.0)
    h2 = jnp.maximum(
        jnp.dot(h1, w2_ref[...], preferred_element_type=jnp.float32) + b2, 0.0)
    head = jnp.dot(h2, wh_ref[...], preferred_element_type=jnp.float32) + bh

    # mean lanes get tanh(.)*2, std lanes get softplus(.)+1e-5 -- selected by a
    # lane mask (pure VPU/EUP work, no cross-lane data movement).
    lane = jax.lax.broadcasted_iota(jnp.int32, head.shape, 1)
    mean = jnp.tanh(head) * 2.0
    softplus = jnp.maximum(head, 0.0) + jnp.log1p(jnp.exp(-jnp.abs(head)))
    out_ref[...] = jnp.where(lane < ac_dim, mean, softplus + 1e-5)


def actor_forward(x, params, *, tb=512):
    """params = dict of w1,b1,w2,b2,wm,bm,ws,bs (weights in [in,out] layout)."""
    B, ob_dim = x.shape
    hidden = params["w1"].shape[1]
    ac_dim = params["wm"].shape[1]

    # Fuse the two heads into one matmul / one bias.
    w_head = jnp.concatenate([params["wm"], params["ws"]], axis=1)   # [hidden, 2*ac_dim]
    b_head = jnp.concatenate([params["bm"], params["bs"]], axis=1)   # [1, 2*ac_dim]

    # Pack all biases into one array -> one DMA, one VMEM tile.
    bw = max(hidden, 2 * ac_dim)
    pad_b = lambda b: jnp.pad(b, ((0, 0), (0, bw - b.shape[1])))
    bpack = jnp.concatenate(
        [pad_b(params["b1"]), pad_b(params["b2"]), pad_b(b_head)], axis=0)  # [3, bw]

    # Batch tiling (weights stay resident across grid steps via constant maps).
    tbatch = max(8, (min(tb, B) // 8) * 8)
    n_tiles = pl.cdiv(B, tbatch)
    b_pad = n_tiles * tbatch
    if b_pad != B:
        x = jnp.pad(x, ((0, b_pad - B), (0, 0)))

    kernel = functools.partial(actor_kernel, hidden=hidden, ac_dim=ac_dim)

    fused = pl.pallas_call(
        kernel,
        out_shape=jax.ShapeDtypeStruct((b_pad, 2 * ac_dim), jnp.float32),
        grid=(n_tiles,),
        in_specs=[
            pl.BlockSpec((tbatch, ob_dim), lambda i: (i, 0)),       # x tile (pipelined)
            pl.BlockSpec((ob_dim, hidden), lambda i: (0, 0)),       # w1 (resident)
            pl.BlockSpec((hidden, hidden), lambda i: (0, 0)),       # w2 (resident)
            pl.BlockSpec((hidden, 2 * ac_dim), lambda i: (0, 0)),   # fused head W (resident)
            pl.BlockSpec((3, bw), lambda i: (0, 0)),                # packed biases (resident)
        ],
        out_specs=pl.BlockSpec((tbatch, 2 * ac_dim), lambda i: (i, 0)),
        compiler_params=pltpu.CompilerParams(
            dimension_semantics=("parallel",)),   # v7x: shard batch tiles over both TCs
    )(x, params["w1"], params["w2"], w_head, bpack)

    fused = fused[:B]
    return fused[:, :ac_dim], fused[:, ac_dim:]


def init_params(key, ob_dim, ac_dim, hidden_dim=64):
    ks = jax.random.split(key, 8)

    def lin(kw, kb, fan_in, fan_out):
        # PyTorch nn.Linear-style uniform(-1/sqrt(fan_in), 1/sqrt(fan_in))
        bound = 1.0 / jnp.sqrt(fan_in)
        w = jax.random.uniform(kw, (fan_in, fan_out), jnp.float32, -bound, bound)
        b = jax.random.uniform(kb, (1, fan_out), jnp.float32, -bound, bound)
        return w, b

    w1, b1 = lin(ks[0], ks[1], ob_dim, hidden_dim)
    w2, b2 = lin(ks[2], ks[3], hidden_dim, hidden_dim)
    wm, bm = lin(ks[4], ks[5], hidden_dim, ac_dim)
    ws, bs = lin(ks[6], ks[7], hidden_dim, ac_dim)
    return dict(w1=w1, b1=b1, w2=w2, b2=b2, wm=wm, bm=bm, ws=ws, bs=bs)


def actor_forward_ref(x, p):
    h1 = jnp.maximum(x @ p["w1"] + p["b1"], 0.0)
    h2 = jnp.maximum(h1 @ p["w2"] + p["b2"], 0.0)
    mean = jnp.tanh(h2 @ p["wm"] + p["bm"]) * 2.0
    std = jax.nn.softplus(h2 @ p["ws"] + p["bs"]) + 1e-5
    return mean, std


# TODO(synk): sample_action (Normal sampling + clamp) is a host-side op on the
# outputs and is intentionally left outside the kernel.

if __name__ == "__main__":
    key = jax.random.PRNGKey(0)
    k_x, k_p = jax.random.split(key)

    B, ob_dim, ac_dim, hidden = 200, 16, 8, 64
    x = jax.random.normal(k_x, (B, ob_dim), jnp.float32)
    params = init_params(k_p, ob_dim, ac_dim, hidden)

    mean_ref, std_ref = actor_forward_ref(x, params)

    # Multi-tile path: tb=64 -> batch padded to 256, grid of 4 pipelined tiles.
    mean, std = actor_forward(x, params, tb=64)
    jax.block_until_ready((mean, std))
    assert mean.shape == (B, ac_dim) and std.shape == (B, ac_dim)
    assert jnp.allclose(mean, mean_ref, atol=2e-5, rtol=2e-5)
    assert jnp.allclose(std, std_ref, atol=2e-5, rtol=2e-5)
    assert bool(jnp.all(std > 0))

    # Single-tile path (default tile size covers the whole batch).
    mean2, std2 = actor_forward(x, params)
    jax.block_until_ready((mean2, std2))
    assert jnp.allclose(mean2, mean_ref, atol=2e-5, rtol=2e-5)
    assert jnp.allclose(std2, std_ref, atol=2e-5, rtol=2e-5)

    print("KERNEL_OK")
</pallas_src>

<mosaic_0001>
module attributes {stable_mosaic.version = 11 : i64} {
  func.func @actor_kernel(%arg0: i32, %arg1: memref<64x16xf32, #tpu.memory_space<vmem>>, %arg2: memref<16x64xf32, #tpu.memory_space<vmem>>, %arg3: memref<64x64xf32, #tpu.memory_space<vmem>>, %arg4: memref<64x16xf32, #tpu.memory_space<vmem>>, %arg5: memref<3x64xf32, #tpu.memory_space<vmem>>, %arg6: memref<64x16xf32, #tpu.memory_space<vmem>>) attributes {dimension_semantics = [#tpu.dimension_semantics<parallel>], iteration_bounds = array<i64: 4>, scalar_prefetch = 0 : i64, scratch_operands = 0 : i64, tpu.core_type = #tpu.core_type<tc>, window_params = [{transform_indices = @transform_0, window_bounds = array<i64: 64, 16>}, {pipeline_mode = #tpu.pipeline_mode<synchronous>, transform_indices = @transform_1, window_bounds = array<i64: 16, 64>}, {pipeline_mode = #tpu.pipeline_mode<synchronous>, transform_indices = @transform_2, window_bounds = array<i64: 64, 64>}, {pipeline_mode = #tpu.pipeline_mode<synchronous>, transform_indices = @transform_3, window_bounds = array<i64: 64, 16>}, {pipeline_mode = #tpu.pipeline_mode<synchronous>, transform_indices = @transform_4, window_bounds = array<i64: 3, 64>}, {transform_indices = @transform_5, window_bounds = array<i64: 64, 16>}]} {
    %c0 = arith.constant 0 : index
    %c0_0 = arith.constant 0 : index
    %0 = vector.load %arg1[%c0, %c0_0] : memref<64x16xf32, #tpu.memory_space<vmem>>, vector<64x16xf32>
    %c0_1 = arith.constant 0 : index
    %c0_2 = arith.constant 0 : index
    %1 = vector.load %arg5[%c0_1, %c0_2] : memref<3x64xf32, #tpu.memory_space<vmem>>, vector<1x64xf32>
    %c1 = arith.constant 1 : index
    %c0_3 = arith.constant 0 : index
    %2 = vector.load %arg5[%c1, %c0_3] : memref<3x64xf32, #tpu.memory_space<vmem>>, vector<1x64xf32>
    %c2 = arith.constant 2 : index
    %c0_4 = arith.constant 0 : index
    %3 = vector.load %arg5[%c2, %c0_4] : memref<3x64xf32, #tpu.memory_space<vmem>>, vector<1x16xf32>
    %c0_5 = arith.constant 0 : index
    %c0_6 = arith.constant 0 : index
    %4 = vector.load %arg2[%c0_5, %c0_6] : memref<16x64xf32, #tpu.memory_space<vmem>>, vector<16x64xf32>
    %cst = arith.constant dense<0.000000e+00> : vector<64x64xf32>
    %5 = tpu.matmul %0, %4, %cst {dimension_numbers = #tpu.dot_dimension_numbers<[1], [0], [0], [1], [0, 0, 1, 1], [], []>} : vector<64x16xf32>, vector<16x64xf32>, vector<64x64xf32> -> vector<64x64xf32>
    %6 = vector.broadcast %1 : vector<1x64xf32> to vector<64x64xf32>
    %7 = arith.addf %5, %6 : vector<64x64xf32>
    %cst_7 = arith.constant 0.000000e+00 : f32
    %8 = vector.broadcast %cst_7 : f32 to vector<64x64xf32>
    %9 = arith.maximumf %7, %8 : vector<64x64xf32>
    %c0_8 = arith.constant 0 : index
    %c0_9 = arith.constant 0 : index
    %10 = vector.load %arg3[%c0_8, %c0_9] : memref<64x64xf32, #tpu.memory_space<vmem>>, vector<64x64xf32>
    %cst_10 = arith.constant dense<0.000000e+00> : vector<64x64xf32>
    %11 = tpu.matmul %9, %10, %cst_10 {dimension_numbers = #tpu.dot_dimension_numbers<[1], [0], [0], [1], [0, 0, 1, 1], [], []>} : vector<64x64xf32>, vector<64x64xf32>, vector<64x64xf32> -> vector<64x64xf32>
    %12 = vector.broadcast %2 : vector<1x64xf32> to vector<64x64xf32>
    %13 = arith.addf %11, %12 : vector<64x64xf32>
    %cst_11 = arith.constant 0.000000e+00 : f32
    %14 = vector.broadcast %cst_11 : f32 to vector<64x64xf32>
    %15 = arith.maximumf %13, %14 : vector<64x64xf32>
    %c0_12 = arith.constant 0 : index
    %c0_13 = arith.constant 0 : index
    %16 = vector.load %arg4[%c0_12, %c0_13] : memref<64x16xf32, #tpu.memory_space<vmem>>, vector<64x16xf32>
    %cst_14 = arith.constant dense<0.000000e+00> : vector<64x16xf32>
    %17 = tpu.matmul %15, %16, %cst_14 {dimension_numbers = #tpu.dot_dimension_numbers<[1], [0], [0], [1], [0, 0, 1, 1], [], []>} : vector<64x64xf32>, vector<64x16xf32>, vector<64x16xf32> -> vector<64x16xf32>
    %18 = vector.broadcast %3 : vector<1x16xf32> to vector<64x16xf32>
    %19 = arith.addf %17, %18 : vector<64x16xf32>
    %20 = tpu.iota {dimensions = array<i32: 1>} : vector<64x16xi32>
    %21 = math.tanh %19 : vector<64x16xf32>
    %cst_15 = arith.constant 2.000000e+00 : f32
    %22 = vector.broadcast %cst_15 : f32 to vector<64x16xf32>
    %23 = arith.mulf %21, %22 : vector<64x16xf32>
    %cst_16 = arith.constant 0.000000e+00 : f32
    %24 = vector.broadcast %cst_16 : f32 to vector<64x16xf32>
    %25 = arith.maximumf %19, %24 : vector<64x16xf32>
    %26 = math.absf %19 : vector<64x16xf32>
    %cst_17 = arith.constant 0.000000e+00 : f32
    %27 = vector.broadcast %cst_17 : f32 to vector<64x16xf32>
    %28 = arith.subf %27, %26 : vector<64x16xf32>
    %29 = math.exp %28 : vector<64x16xf32>
    %30 = math.log1p %29 : vector<64x16xf32>
    %31 = arith.addf %25, %30 : vector<64x16xf32>
    %c8_i32 = arith.constant 8 : i32
    %32 = vector.broadcast %c8_i32 : i32 to vector<64x16xi32>
    %33 = arith.cmpi slt, %20, %32 : vector<64x16xi32>
    %cst_18 = arith.constant 9.99999974E-6 : f32
    %34 = vector.broadcast %cst_18 : f32 to vector<64x16xf32>
    %35 = arith.addf %31, %34 : vector<64x16xf32>
    %36 = arith.select %33, %23, %35 : vector<64x16xi1>, vector<64x16xf32>
    %c0_19 = arith.constant 0 : index
    %c0_20 = arith.constant 0 : index
    %37 = vector.load %arg6[%c0_19, %c0_20] : memref<64x16xf32, #tpu.memory_space<vmem>>, vector<64x16xf32>
    tpu.vector_store %arg6[%c0_19, %c0_20], %36 {strides = array<i32>} : memref<64x16xf32, #tpu.memory_space<vmem>>, vector<64x16xf32>,
    return
  }
  func.func @transform_0(%arg0: i32) -> (i32, i32) {
    %c0_i32 = arith.constant 0 : i32
    %c0_i32_0 = arith.constant 0 : i32
    return %arg0, %c0_i32 : i32, i32
  }
  func.func @transform_1(%arg0: i32) -> (i32, i32) {
    %c0_i32 = arith.constant 0 : i32
    %c0_i32_0 = arith.constant 0 : i32
    %c0_i32_1 = arith.constant 0 : i32
    return %c0_i32, %c0_i32_0 : i32, i32
  }
  func.func @transform_2(%arg0: i32) -> (i32, i32) {
    %c0_i32 = arith.constant 0 : i32
    %c0_i32_0 = arith.constant 0 : i32
    %c0_i32_1 = arith.constant 0 : i32
    return %c0_i32, %c0_i32_0 : i32, i32
  }
  func.func @transform_3(%arg0: i32) -> (i32, i32) {
    %c0_i32 = arith.constant 0 : i32
    %c0_i32_0 = arith.constant 0 : i32
    %c0_i32_1 = arith.constant 0 : i32
    return %c0_i32, %c0_i32_0 : i32, i32
  }
  func.func @transform_4(%arg0: i32) -> (i32, i32) {
    %c0_i32 = arith.constant 0 : i32
    %c0_i32_0 = arith.constant 0 : i32
    %c0_i32_1 = arith.constant 0 : i32
    return %c0_i32, %c0_i32_0 : i32, i32
  }
  func.func @transform_5(%arg0: i32) -> (i32, i32) {
    %c0_i32 = arith.constant 0 : i32
    %c0_i32_0 = arith.constant 0 : i32
    return %arg0, %c0_i32 : i32, i32
  }
}

</mosaic_0001>

<llo_original>
// kernel: tpu_custom_call.1
$region0: #{tpu_custom_call.1}
  #allocation0 [shape = 'u32[]', space=smem, size = 0x4, offset = 0x4, fixed_abs, tag = 'smem constant byte address 0x4 - core index']
  #allocation1 [shape = 'u32[144,128]{1,0:T(1,128)}', space=vmem, size = 0x12000, scoped, tag = 'internal scratch']
  %s0 = inlined_call_operand.vmem [shape: f32[256,16], index: 0, kind: input, shape index: {}]
  %s1 = inlined_call_operand.vmem [shape: f32[16,64], index: 1, kind: input, shape index: {}]
  %s2 = inlined_call_operand.vmem [shape: f32[64,64], index: 2, kind: input, shape index: {}]
  %s3 = inlined_call_operand.vmem [shape: f32[64,16], index: 3, kind: input, shape index: {}]
  %s4 = inlined_call_operand.vmem [shape: f32[3,64], index: 4, kind: input, shape index: {}]
  %s5 = inlined_call_operand.vmem [shape: f32[256,16], index: 5, kind: output, shape index: {}]
  %s6 = sld [smem:[#allocation0]]
  $region53: #{tpu_custom_call.1} parent=0
    _
  %s8 = ssub.s32 1, %s6
  %s9 = scalar_select 0, %s8, %s6
  loop: start=0, step=1, limit=6
  $region2: #{tpu_custom_call.1} parent=0 // loop_pre_header
    _
  $region3: #{tpu_custom_call.1} parent=0 // loop_header
    %s11 = sphi 0, %s15
    %p12 = scmp.ge.s32.totalorder %s11, 6
    %s21 = sphi 0, %s23
    %s24 = sphi 0, %s21
    %s25 = sphi 0, %s24
    %s41 = sphi 0, %s25
    %s45 = sphi 0, %s45
    %s47 = sphi 0, %s45
    %s48 = sphi 0, %s47
    %s62 = sphi 0, %s48
    %s66 = sphi 0, %s66
    %s68 = sphi 0, %s66
    %s69 = sphi 0, %s68
    %s83 = sphi 0, %s69
    %s87 = sphi 0, %s87
    %s89 = sphi 0, %s87
    %s90 = sphi 0, %s89
    %s104 = sphi 0, %s90
    %s108 = sphi 0, %s108
    %s110 = sphi 0, %s108
    %s111 = sphi 0, %s110
    %s125 = sphi 0, %s111
    %s131 = sphi 0, %s133
    %s134 = sphi 0, %s131
    %s135 = sphi 0, %s134
    %s151 = sphi 0, %s135
  $region4: #{tpu_custom_call.1} parent=0 // loop_header_branch
    %14 = sbr.rel (%p12) target = $region8
  $region5: #{tpu_custom_call.1} parent=0 // loop_body
    %s16 = ssub.s32 %s11, 1
    %s17 = ssub.s32 %s11, 2
    %s18 = sadd.s32 %s11, 1
    %s19 = ssub.s32 %s11, %s18
    %p20 = scmp.eq.s32.totalorder %s19, 0
    %s22 = sadd.s32 %s21, 1
    %s23 = scalar_select %p20, %s21, %s22
    %p26 = pneg %p20
    %p27 = scmp.eq.s32.totalorder %s11, 3
    %p28 = por %p26, %p27
    %p29 = scmp.ne.s32.totalorder %s21, %s24
    %p30 = scmp.eq.s32.totalorder %s11, 0
    %p31 = por %p29, %p30
    %p32 = scmp.ne.s32.totalorder %s21, %s24
    %p33 = scmp.eq.s32.totalorder %s16, 3
    %p34 = por %p32, %p33
    %p35 = scmp.ne.s32.totalorder %s24, %s25
    %p36 = scmp.eq.s32.totalorder %s16, 0
    %p37 = por %p35, %p36
    %p38 = scmp.ne.s32.totalorder %s24, %s25
    %p39 = scmp.eq.s32.totalorder %s17, 3
    %p40 = por %p38, %p39
    %p42 = scmp.ne.s32.totalorder %s25, %s41
    %p43 = scmp.eq.s32.totalorder %s17, 0
    %p44 = por %p42, %p43
    %s46 = sadd.s32 %s45, 1
    %p49 = scmp.eq.s32.totalorder %s11, 3
    %p50 = scmp.ne.s32.totalorder %s45, %s47
    %p51 = scmp.eq.s32.totalorder %s11, 0
    %p52 = por %p50, %p51
    %p53 = scmp.ne.s32.totalorder %s45, %s47
    %p54 = scmp.eq.s32.totalorder %s16, 3
    %p55 = por %p53, %p54
    %p56 = scmp.ne.s32.totalorder %s47, %s48
    %p57 = scmp.eq.s32.totalorder %s16, 0
    %p58 = por %p56, %p57
    %p59 = scmp.ne.s32.totalorder %s47, %s48
    %p60 = scmp.eq.s32.totalorder %s17, 3
    %p61 = por %p59, %p60
    %p63 = scmp.ne.s32.totalorder %s48, %s62
    %p64 = scmp.eq.s32.totalorder %s17, 0
    %p65 = por %p63, %p64
    %s67 = sadd.s32 %s66, 1
    %p70 = scmp.eq.s32.totalorder %s11, 3
    %p71 = scmp.ne.s32.totalorder %s66, %s68
    %p72 = scmp.eq.s32.totalorder %s11, 0
    %p73 = por %p71, %p72
    %p74 = scmp.ne.s32.totalorder %s66, %s68
    %p75 = scmp.eq.s32.totalorder %s16, 3
    %p76 = por %p74, %p75
    %p77 = scmp.ne.s32.totalorder %s68, %s69
    %p78 = scmp.eq.s32.totalorder %s16, 0
    %p79 = por %p77, %p78
    %p80 = scmp.ne.s32.totalorder %s68, %s69
    %p81 = scmp.eq.s32.totalorder %s17, 3
    %p82 = por %p80, %p81
    %p84 = scmp.ne.s32.totalorder %s69, %s83
    %p85 = scmp.eq.s32.totalorder %s17, 0
    %p86 = por %p84, %p85
    %s88 = sadd.s32 %s87, 1
    %p91 = scmp.eq.s32.totalorder %s11, 3
    %p92 = scmp.ne.s32.totalorder %s87, %s89
    %p93 = scmp.eq.s32.totalorder %s11, 0
    %p94 = por %p92, %p93
    %p95 = scmp.ne.s32.totalorder %s87, %s89
    %p96 = scmp.eq.s32.totalorder %s16, 3
    %p97 = por %p95, %p96
    %p98 = scmp.ne.s32.totalorder %s89, %s90
    %p99 = scmp.eq.s32.totalorder %s16, 0
    %p100 = por %p98, %p99
    %p101 = scmp.ne.s32.totalorder %s89, %s90
    %p102 = scmp.eq.s32.totalorder %s17, 3
    %p103 = por %p101, %p102
    %p105 = scmp.ne.s32.totalorder %s90, %s104
    %p106 = scmp.eq.s32.totalorder %s17, 0
    %p107 = por %p105, %p106
    %s109 = sadd.s32 %s108, 1
    %p112 = scmp.eq.s32.totalorder %s11, 3
    %p113 = scmp.ne.s32.totalorder %s108, %s110
    %p114 = scmp.eq.s32.totalorder %s11, 0
    %p115 = por %p113, %p114
    %p116 = scmp.ne.s32.totalorder %s108, %s110
    %p117 = scmp.eq.s32.totalorder %s16, 3
    %p118 = por %p116, %p117
    %p119 = scmp.ne.s32.totalorder %s110, %s111
    %p120 = scmp.eq.s32.totalorder %s16, 0
    %p121 = por %p119, %p120
    %p122 = scmp.ne.s32.totalorder %s110, %s111
    %p123 = scmp.eq.s32.totalorder %s17, 3
    %p124 = por %p122, %p123
    %p126 = scmp.ne.s32.totalorder %s111, %s125
    %p127 = scmp.eq.s32.totalorder %s17, 0
    %p128 = por %p126, %p127
    %s129 = ssub.s32 %s11, %s18
    %p130 = scmp.eq.s32.totalorder %s129, 0
    %s132 = sadd.s32 %s131, 1
    %s133 = scalar_select %p130, %s131, %s132
    %p136 = pneg %p130
    %p137 = scmp.eq.s32.totalorder %s11, 3
    %p138 = por %p136, %p137
    %p139 = scmp.ne.s32.totalorder %s131, %s134
    %p140 = scmp.eq.s32.totalorder %s11, 0
    %p141 = por %p139, %p140
    %p142 = scmp.ne.s32.totalorder %s131, %s134
    %p143 = scmp.eq.s32.totalorder %s16, 3
    %p144 = por %p142, %p143
    %p145 = scmp.ne.s32.totalorder %s134, %s135
    %p146 = scmp.eq.s32.totalorder %s16, 0
    %p147 = por %p145, %p146
    %p148 = scmp.ne.s32.totalorder %s134, %s135
    %p149 = scmp.eq.s32.totalorder %s17, 3
    %p150 = por %p148, %p149
    %p152 = scmp.ne.s32.totalorder %s135, %s151
    %p153 = scmp.eq.s32.totalorder %s17, 0
    %p154 = por %p152, %p153
    %p155 = scmp.le.s32.totalorder 1, %s11
    %p156 = scmp.lt.s32.totalorder %s11, 5
    %p157 = pnand %p155, %p156
    %p158 = pneg %p157
    // Predicated region
    $region9: #{tpu_custom_call.1} parent=5 // pred_check
      _
    $region10: #{tpu_custom_call.1} parent=5 // pred_check_branch
      %160 = sbr.rel (%p157) target = $region12
    $region11: #{tpu_custom_call.1} parent=5 // pred_region
      %s161 = ssub.s32 %s11, 1
      // Predicated region
      $region13: #{tpu_custom_call.1} parent=11 // pred_check
        %p162 = pneg %p58
      $region14: #{tpu_custom_call.1} parent=11 // pred_check_branch
        %164 = sbr.rel (%p162) target = $region16
      $region15: #{tpu_custom_call.1} parent=11 // pred_region
        _
      $region16: #{tpu_custom_call.1} parent=11 // pred_fallthru
        _
      // Predicated region
      $region17: #{tpu_custom_call.1} parent=11 // pred_check
        %p165 = pneg %p79
      $region18: #{tpu_custom_call.1} parent=11 // pred_check_branch
        %167 = sbr.rel (%p165) target = $region20
      $region19: #{tpu_custom_call.1} parent=11 // pred_region
        _
      $region20: #{tpu_custom_call.1} parent=11 // pred_fallthru
        _
      // Predicated region
      $region21: #{tpu_custom_call.1} parent=11 // pred_check
        %p168 = pneg %p100
      $region22: #{tpu_custom_call.1} parent=11 // pred_check_branch
        %170 = sbr.rel (%p168) target = $region24
      $region23: #{tpu_custom_call.1} parent=11 // pred_region
        _
      $region24: #{tpu_custom_call.1} parent=11 // pred_fallthru
        _
      // Predicated region
      $region25: #{tpu_custom_call.1} parent=11 // pred_check
        %p171 = pneg %p121
      $region26: #{tpu_custom_call.1} parent=11 // pred_check_branch
        %173 = sbr.rel (%p171) target = $region28
      $region27: #{tpu_custom_call.1} parent=11 // pred_region
        _
      $region28: #{tpu_custom_call.1} parent=11 // pred_fallthru
        _
    $region12: #{tpu_custom_call.1} parent=5 // pred_fallthru
      _
    %p174 = scmp.lt.s32.totalorder %s11, 4
    // Predicated region
    $region29: #{tpu_custom_call.1} parent=5 // pred_check
      %p175 = pneg %p174
    $region30: #{tpu_custom_call.1} parent=5 // pred_check_branch
      %177 = sbr.rel (%p175) target = $region32
    $region31: #{tpu_custom_call.1} parent=5 // pred_region
      // Predicated region
      $region33: #{tpu_custom_call.1} parent=31 // pred_check
        %p178 = pneg %p31
      $region34: #{tpu_custom_call.1} parent=31 // pred_check_branch
        %180 = sbr.rel (%p178) target = $region36
      $region35: #{tpu_custom_call.1} parent=31 // pred_region
        %s181 = smul.u32 8, %s11
        %p182 = scmp.lt.s32.totalorder %s181, 31
        %s183 = scalar_select %p182, %s181, 31
        %s184 = smul.addr %s183, 8
        %s185 = scalar_lea.vmem %s0, %s184
        %s186 = smul.u32 8, %s11
      $region36: #{tpu_custom_call.1} parent=31 // pred_fallthru
        _
    $region32: #{tpu_custom_call.1} parent=5 // pred_fallthru
      _
    %p187 = scmp.le.s32.totalorder 1, %s11
    %p188 = scmp.lt.s32.totalorder %s11, 5
    %p189 = pnand %p187, %p188
    %p190 = pneg %p189
    // Predicated region
    $region37: #{tpu_custom_call.1} parent=5 // pred_check
      _
    $region38: #{tpu_custom_call.1} parent=5 // pred_check_branch
      %192 = sbr.rel (%p189) target = $region40
    $region39: #{tpu_custom_call.1} parent=5 // pred_region
      %s193 = ssub.s32 %s11, 1
      %s194 = smul.u32 8, %s16
      %p195 = scmp.lt.s32.totalorder %s194, 31
      %s196 = scalar_select %p195, %s194, 31
      %s197 = smul.addr %s196, 8
      %s198 = scalar_lea.vmem %s0, %s197
      %p199 = pneg %p37
      %p200 = pneg %p34
      %p201 = pneg %p58
      %p202 = pneg %p55
      %p203 = pneg %p79
      %p204 = pneg %p76
      %p205 = pneg %p100
      %p206 = pneg %p97
      %p207 = pneg %p121
      %p208 = pneg %p118
      %p209 = pneg %p147
      %p210 = pneg %p144
      %s211 = smul.u32 8, %s16
      %p212 = scmp.lt.s32.totalorder %s211, 31
      %s213 = scalar_select %p212, %s211, 31
      %s214 = smul.addr %s213, 8
      %s215 = scalar_lea.vmem %s5, %s214
      %s216 = smul.u32 8, %s16
      %p217 = scmp.lt.s32.totalorder %s216, 31
      %s218 = scalar_select %p217, %s216, 31
      %s219 = smul.addr %s218, 8
      %s220 = scalar_lea.vmem %s0, %s219
      %s221 = smul.u32 8, %s16
      %s222 = smul.u32 8, %s16
      %p223 = scmp.lt.s32.totalorder %s222, 31
      %s224 = scalar_select %p223, %s222, 31
      %s225 = smul.addr %s224, 8
      %s226 = scalar_lea.vmem %s5, %s225
      %s227 = smul.u32 8, %s16
      %v228 = vld [vmem:[%s220] sm:$0xff]
      %v229 = vld [vmem:[%s220 + $0x8] sm:$0xff]
      %v230 = vld [vmem:[%s220 + $0x10] sm:$0xff]
      %v231 = vld [vmem:[%s220 + $0x18] sm:$0xff]
      %v232 = vld [vmem:[%s220 + $0x20] sm:$0xff]
      %v233 = vld [vmem:[%s220 + $0x28] sm:$0xff]
      %v234 = vld [vmem:[%s220 + $0x30] sm:$0xff]
      %v235 = vld [vmem:[%s220 + $0x38] sm:$0xff]
      %v236 = vld [vmem:[%s4] sm:$0x1]
      %v237 = vld [vmem:[%s4 + $0x1] sm:$0x1]
      %v238 = vld [vmem:[%s4 + $0x2] sm:$0x1]
      %v239 = vld [vmem:[%s1] sm:$0xff]
      %v240 = vld [vmem:[%s1 + $0x8] sm:$0xff]
      %v241 = vlaneseq
      %v242 = vshrl.u32 %v241, 7
      %v243 = vsub.s32 0, %v242
      %v244 = vrot.slane %v236, %v243
      %vm245 = vcmask 130048
      %v247 = vsel %vm245, %v228, 0
      %v250 = vsel %vm245, %v229, 0
      %v253 = vsel %vm245, %v230, 0
      %v256 = vsel %vm245, %v231, 0
      %v259 = vsel %vm245, %v232, 0
      %v262 = vsel %vm245, %v233, 0
      %v265 = vsel %vm245, %v234, 0
      %v268 = vsel %vm245, %v235, 0
      %270 = vmatprep.subr.mxu0 0.0
      %271 = vmatpush1.msra.mxu0 %v239
      %272 = vmatprep.subr.mxu0 0.0
      %273 = vmatpush1.msra.mxu0 %v240
      %274 = vmatprep.subr.mxu0 0.0
      %275 = vmatpush1.msra.mxu0 0.0
      %276 = vmatprep.subr.mxu0 0.0
      %277 = vmatpush1.msra.mxu0 0.0
      %278 = vmatprep.subr.mxu0 0.0
      %279 = vmatpush1.msra.mxu0 0.0
      %280 = vmatprep.subr.mxu0 0.0
      %281 = vmatpush1.msra.mxu0 0.0
      %282 = vmatprep.subr.mxu0 0.0
      %283 = vmatpush1.msra.mxu0 0.0
      %284 = vmatprep.subr.mxu0 0.0
      %285 = vmatpush1.msra.mxu0 0.0
      %286 = vmatprep.subr.mxu0 0.0
      %287 = vmatpush1.msra.mxu0 0.0
      %288 = vmatprep.subr.mxu0 0.0
      %289 = vmatpush1.msra.mxu0 0.0
      %290 = vmatprep.subr.mxu0 0.0
      %291 = vmatpush1.msra.mxu0 0.0
      %292 = vmatprep.subr.mxu0 0.0
      %293 = vmatpush1.msra.mxu0 0.0
      %294 = vmatprep.subr.mxu0 0.0
      %295 = vmatpush1.msra.mxu0 0.0
      %296 = vmatprep.subr.mxu0 0.0
      %297 = vmatpush1.msra.mxu0 0.0
      %298 = vmatprep.subr.mxu0 0.0
      %299 = vmatpush1.msra.mxu0 0.0
      %300 = vmatprep.subr.mxu0 0.0
      %301 = vmatpush1.msra.mxu0 0.0
      %302 = vmatprep.subr.mxu0 0.0
      %303 = vmatpush1.msra.mxu0 0.0
      %304 = vmatprep.subr.mxu0 0.0
      %305 = vmatpush1.msra.mxu0 0.0
      %306 = vmatprep.subr.mxu0 0.0
      %307 = vmatpush1.msra.mxu0 0.0
      %308 = vmatprep.subr.mxu0 0.0
      %309 = vmatpush1.msra.mxu0 0.0
      %310 = vmatprep.subr.mxu0 0.0
      %311 = vmatpush1.msra.mxu0 0.0
      %312 = vmatprep.subr.mxu0 0.0
      %313 = vmatpush1.msra.mxu0 0.0
      %314 = vmatprep.subr.mxu0 0.0
      %315 = vmatpush1.msra.mxu0 0.0
      %316 = vmatprep.subr.mxu0 0.0
      %317 = vmatpush1.msra.mxu0 0.0
      %318 = vmatprep.subr.mxu0 0.0
      %319 = vmatpush1.msra.mxu0 0.0
      %320 = vmatprep.subr.mxu0 0.0
      %321 = vmatpush1.msra.mxu0 0.0
      %322 = vmatprep.subr.mxu0 0.0
      %323 = vmatpush1.msra.mxu0 0.0
      %324 = vmatprep.subr.mxu0 0.0
      %325 = vmatpush1.msra.mxu0 0.0
      %326 = vmatprep.subr.mxu0 0.0
      %327 = vmatpush1.msra.mxu0 0.0
      %328 = vmatprep.subr.mxu0 0.0
      %329 = vmatpush1.msra.mxu0 0.0
      %330 = vmatprep.subr.mxu0 0.0
      %331 = vmatpush1.msra.mxu0 0.0
      %332 = vmatprep.subr.mxu0 0.0
      %333 = vmatpush1.msra.mxu0 0.0
      %334 = vmatprep.mubr.f32.mxu0 0.0
      %335 = vmatmul.mubr.f32.gmra.mrb[0].mxu0 %v247
      %v336 = vpop.f32.mrb[0].mxu0
      %v337 = vadd.f32 %v244, %v336
      %v338 = vpop.f32.mrb[0].mxu0
      %339 = vmatprep.mubr.f32.mxu0 0.0
      %340 = vmatmul.mubr.f32.gmra.mrb[0].mxu0 %v250
      %v341 = vpop.f32.mrb[0].mxu0
      %v342 = vadd.f32 %v244, %v341
      %v343 = vpop.f32.mrb[0].mxu0
      %344 = vmatprep.mubr.f32.mxu0 0.0
      %345 = vmatmul.mubr.f32.gmra.mrb[0].mxu0 %v253
      %v346 = vpop.f32.mrb[0].mxu0
      %v347 = vadd.f32 %v244, %v346
      %v348 = vpop.f32.mrb[0].mxu0
      %349 = vmatprep.mubr.f32.mxu0 0.0
      %350 = vmatmul.mubr.f32.gmra.mrb[0].mxu0 %v256
      %v351 = vpop.f32.mrb[0].mxu0
      %v352 = vadd.f32 %v244, %v351
      %v353 = vpop.f32.mrb[0].mxu0
      %354 = vmatprep.mubr.f32.mxu0 0.0
      %355 = vmatmul.mubr.f32.gmra.mrb[0].mxu0 %v259
      %v356 = vpop.f32.mrb[0].mxu0
      %v357 = vadd.f32 %v244, %v356
      %v358 = vpop.f32.mrb[0].mxu0
      %359 = vmatprep.mubr.f32.mxu0 0.0
      %360 = vmatmul.mubr.f32.gmra.mrb[0].mxu0 %v262
      %v361 = vpop.f32.mrb[0].mxu0
      %v362 = vadd.f32 %v244, %v361
      %v363 = vpop.f32.mrb[0].mxu0
      %364 = vmatprep.mubr.f32.mxu0 0.0
      %365 = vmatmul.mubr.f32.gmra.mrb[0].mxu0 %v265
      %v366 = vpop.f32.mrb[0].mxu0
      %v367 = vadd.f32 %v244, %v366
      %v368 = vpop.f32.mrb[0].mxu0
      %369 = vmatprep.mubr.f32.mxu0 0.0
      %370 = vmatmul.mubr.f32.gmra.mrb[0].mxu0 %v268
      %v371 = vpop.f32.mrb[0].mxu0
      %v372 = vadd.f32 %v244, %v371
      %v373 = vpop.f32.mrb[0].mxu0
      %374 = vdwg.mxu0
      %v375 = vmax.f32 %v337, 0.0
      %v376 = vmax.f32 %v342, 0.0
      %v377 = vmax.f32 %v347, 0.0
      %v378 = vmax.f32 %v352, 0.0
      %v379 = vmax.f32 %v357, 0.0
      %v380 = vmax.f32 %v362, 0.0
      %v381 = vmax.f32 %v367, 0.0
      %v382 = vmax.f32 %v372, 0.0
      %v383 = vld [vmem:[%s2] sm:$0xff]
      %v384 = vld [vmem:[%s2 + $0x8] sm:$0xff]
      %v385 = vld [vmem:[%s2 + $0x10] sm:$0xff]
      %v386 = vld [vmem:[%s2 + $0x18] sm:$0xff]
      %v387 = vld [vmem:[%s2 + $0x20] sm:$0xff]
      %v388 = vld [vmem:[%s2 + $0x28] sm:$0xff]
      %v389 = vld [vmem:[%s2 + $0x30] sm:$0xff]
      %v390 = vld [vmem:[%s2 + $0x38] sm:$0xff]
      %v391 = vlaneseq
      %v392 = vshrl.u32 %v391, 7
      %v393 = vsub.s32 0, %v392
      %v394 = vrot.slane %v237, %v393
      %vm395 = vcmask 523264
      %v397 = vsel %vm395, %v375, 0
      %v400 = vsel %vm395, %v376, 0
      %v403 = vsel %vm395, %v377, 0
      %v406 = vsel %vm395, %v378, 0
      %v409 = vsel %vm395, %v379, 0
      %v412 = vsel %vm395, %v380, 0
      %v415 = vsel %vm395, %v381, 0
      %v418 = vsel %vm395, %v382, 0
      %420 = vmatprep.subr.mxu0 0.0
      %421 = vmatpush1.msra.mxu0 %v383
      %422 = vmatprep.subr.mxu0 0.0
      %423 = vmatpush1.msra.mxu0 %v384
      %424 = vmatprep.subr.mxu0 0.0
      %425 = vmatpush1.msra.mxu0 %v385
      %426 = vmatprep.subr.mxu0 0.0
      %427 = vmatpush1.msra.mxu0 %v386
      %428 = vmatprep.subr.mxu0 0.0
      %429 = vmatpush1.msra.mxu0 %v387
      %430 = vmatprep.subr.mxu0 0.0
      %431 = vmatpush1.msra.mxu0 %v388
      %432 = vmatprep.subr.mxu0 0.0
      %433 = vmatpush1.msra.mxu0 %v389
      %434 = vmatprep.subr.mxu0 0.0
      %435 = vmatpush1.msra.mxu0 %v390
      %436 = vmatprep.subr.mxu0 0.0
      %437 = vmatpush1.msra.mxu0 0.0
      %438 = vmatprep.subr.mxu0 0.0
      %439 = vmatpush1.msra.mxu0 0.0
      %440 = vmatprep.subr.mxu0 0.0
      %441 = vmatpush1.msra.mxu0 0.0
      %442 = vmatprep.subr.mxu0 0.0
      %443 = vmatpush1.msra.mxu0 0.0
      %444 = vmatprep.subr.mxu0 0.0
      %445 = vmatpush1.msra.mxu0 0.0
      %446 = vmatprep.subr.mxu0 0.0
      %447 = vmatpush1.msra.mxu0 0.0
      %448 = vmatprep.subr.mxu0 0.0
      %449 = vmatpush1.msra.mxu0 0.0
      %450 = vmatprep.subr.mxu0 0.0
      %451 = vmatpush1.msra.mxu0 0.0
      %452 = vmatprep.subr.mxu0 0.0
      %453 = vmatpush1.msra.mxu0 0.0
      %454 = vmatprep.subr.mxu0 0.0
      %455 = vmatpush1.msra.mxu0 0.0
      %456 = vmatprep.subr.mxu0 0.0
      %457 = vmatpush1.msra.mxu0 0.0
      %458 = vmatprep.subr.mxu0 0.0
      %459 = vmatpush1.msra.mxu0 0.0
      %460 = vmatprep.subr.mxu0 0.0
      %461 = vmatpush1.msra.mxu0 0.0
      %462 = vmatprep.subr.mxu0 0.0
      %463 = vmatpush1.msra.mxu0 0.0
      %464 = vmatprep.subr.mxu0 0.0
      %465 = vmatpush1.msra.mxu0 0.0
      %466 = vmatprep.subr.mxu0 0.0
      %467 = vmatpush1.msra.mxu0 0.0
      %468 = vmatprep.subr.mxu0 0.0
      %469 = vmatpush1.msra.mxu0 0.0
      %470 = vmatprep.subr.mxu0 0.0
      %471 = vmatpush1.msra.mxu0 0.0
      %472 = vmatprep.subr.mxu0 0.0
      %473 = vmatpush1.msra.mxu0 0.0
      %474 = vmatprep.subr.mxu0 0.0
      %475 = vmatpush1.msra.mxu0 0.0
      %476 = vmatprep.subr.mxu0 0.0
      %477 = vmatpush1.msra.mxu0 0.0
      %478 = vmatprep.subr.mxu0 0.0
      %479 = vmatpush1.msra.mxu0 0.0
      %480 = vmatprep.subr.mxu0 0.0
      %481 = vmatpush1.msra.mxu0 0.0
      %482 = vmatprep.subr.mxu0 0.0
      %483 = vmatpush1.msra.mxu0 0.0
      %484 = vmatprep.mubr.f32.mxu0 0.0
      %485 = vmatmul.mubr.f32.gmra.mrb[0].mxu0 %v397
      %v486 = vpop.f32.mrb[0].mxu0
      %v487 = vadd.f32 %v394, %v486
      %v488 = vpop.f32.mrb[0].mxu0
      %489 = vmatprep.mubr.f32.mxu0 0.0
      %490 = vmatmul.mubr.f32.gmra.mrb[0].mxu0 %v400
      %v491 = vpop.f32.mrb[0].mxu0
      %v492 = vadd.f32 %v394, %v491
      %v493 = vpop.f32.mrb[0].mxu0
      %494 = vmatprep.mubr.f32.mxu0 0.0
      %495 = vmatmul.mubr.f32.gmra.mrb[0].mxu0 %v403
      %v496 = vpop.f32.mrb[0].mxu0
      %v497 = vadd.f32 %v394, %v496
      %v498 = vpop.f32.mrb[0].mxu0
      %499 = vmatprep.mubr.f32.mxu0 0.0
      %500 = vmatmul.mubr.f32.gmra.mrb[0].mxu0 %v406
      %v501 = vpop.f32.mrb[0].mxu0
      %v502 = vadd.f32 %v394, %v501
      %v503 = vpop.f32.mrb[0].mxu0
      %504 = vmatprep.mubr.f32.mxu0 0.0
      %505 = vmatmul.mubr.f32.gmra.mrb[0].mxu0 %v409
      %v506 = vpop.f32.mrb[0].mxu0
      %v507 = vadd.f32 %v394, %v506
      %v508 = vpop.f32.mrb[0].mxu0
      %509 = vmatprep.mubr.f32.mxu0 0.0
      %510 = vmatmul.mubr.f32.gmra.mrb[0].mxu0 %v412
      %v511 = vpop.f32.mrb[0].mxu0
      %v512 = vadd.f32 %v394, %v511
      %v513 = vpop.f32.mrb[0].mxu0
      %514 = vmatprep.mubr.f32.mxu0 0.0
      %515 = vmatmul.mubr.f32.gmra.mrb[0].mxu0 %v415
      %v516 = vpop.f32.mrb[0].mxu0
      %v517 = vadd.f32 %v394, %v516
      %v518 = vpop.f32.mrb[0].mxu0
      %519 = vmatprep.mubr.f32.mxu0 0.0
      %520 = vmatmul.mubr.f32.gmra.mrb[0].mxu0 %v418
      %v521 = vpop.f32.mrb[0].mxu0
      %v522 = vadd.f32 %v394, %v521
      %v523 = vpop.f32.mrb[0].mxu0
      %524 = vdwg.mxu0
      %v525 = vmax.f32 %v487, 0.0
      %v526 = vmax.f32 %v492, 0.0
      %v527 = vmax.f32 %v497, 0.0
      %v528 = vmax.f32 %v502, 0.0
      %v529 = vmax.f32 %v507, 0.0
      %v530 = vmax.f32 %v512, 0.0
      %v531 = vmax.f32 %v517, 0.0
      %v532 = vmax.f32 %v522, 0.0
      %v533 = vld [vmem:[%s3] sm:$0xff]
      %v534 = vld [vmem:[%s3 + $0x8] sm:$0xff]
      %v535 = vld [vmem:[%s3 + $0x10] sm:$0xff]
      %v536 = vld [vmem:[%s3 + $0x18] sm:$0xff]
      %v537 = vld [vmem:[%s3 + $0x20] sm:$0xff]
      %v538 = vld [vmem:[%s3 + $0x28] sm:$0xff]
      %v539 = vld [vmem:[%s3 + $0x30] sm:$0xff]
      %v540 = vld [vmem:[%s3 + $0x38] sm:$0xff]
      %v541 = vlaneseq
      %v542 = vshrl.u32 %v541, 7
      %v543 = vsub.s32 0, %v542
      %v544 = vrot.slane %v238, %v543
      %v546 = vsel %vm395, %v525, 0
      %v549 = vsel %vm395, %v526, 0
      %v552 = vsel %vm395, %v527, 0
      %v555 = vsel %vm395, %v528, 0
      %v558 = vsel %vm395, %v529, 0
      %v561 = vsel %vm395, %v530, 0
      %v564 = vsel %vm395, %v531, 0
      %v567 = vsel %vm395, %v532, 0
      %569 = vmatprep.subr.mxu0 0.0
      %570 = vmatpush1.msra.mxu0 %v533
      %571 = vmatprep.subr.mxu0 0.0
      %572 = vmatpush1.msra.mxu0 %v534
      %573 = vmatprep.subr.mxu0 0.0
      %574 = vmatpush1.msra.mxu0 %v535
      %575 = vmatprep.subr.mxu0 0.0
      %576 = vmatpush1.msra.mxu0 %v536
      %577 = vmatprep.subr.mxu0 0.0
      %578 = vmatpush1.msra.mxu0 %v537
      %579 = vmatprep.subr.mxu0 0.0
      %580 = vmatpush1.msra.mxu0 %v538
      %581 = vmatprep.subr.mxu0 0.0
      %582 = vmatpush1.msra.mxu0 %v539
      %583 = vmatprep.subr.mxu0 0.0
      %584 = vmatpush1.msra.mxu0 %v540
      %585 = vmatprep.subr.mxu0 0.0
      %586 = vmatpush1.msra.mxu0 0.0
      %587 = vmatprep.subr.mxu0 0.0
      %588 = vmatpush1.msra.mxu0 0.0
      %589 = vmatprep.subr.mxu0 0.0
      %590 = vmatpush1.msra.mxu0 0.0
      %591 = vmatprep.subr.mxu0 0.0
      %592 = vmatpush1.msra.mxu0 0.0
      %593 = vmatprep.subr.mxu0 0.0
      %594 = vmatpush1.msra.mxu0 0.0
      %595 = vmatprep.subr.mxu0 0.0
      %596 = vmatpush1.msra.mxu0 0.0
      %597 = vmatprep.subr.mxu0 0.0
      %598 = vmatpush1.msra.mxu0 0.0
      %599 = vmatprep.subr.mxu0 0.0
      %600 = vmatpush1.msra.mxu0 0.0
      %601 = vmatprep.subr.mxu0 0.0
      %602 = vmatpush1.msra.mxu0 0.0
      %603 = vmatprep.subr.mxu0 0.0
      %604 = vmatpush1.msra.mxu0 0.0
      %605 = vmatprep.subr.mxu0 0.0
      %606 = vmatpush1.msra.mxu0 0.0
      %607 = vmatprep.subr.mxu0 0.0
      %608 = vmatpush1.msra.mxu0 0.0
      %609 = vmatprep.subr.mxu0 0.0
      %610 = vmatpush1.msra.mxu0 0.0
      %611 = vmatprep.subr.mxu0 0.0
      %612 = vmatpush1.msra.mxu0 0.0
      %613 = vmatprep.subr.mxu0 0.0
      %614 = vmatpush1.msra.mxu0 0.0
      %615 = vmatprep.subr.mxu0 0.0
      %616 = vmatpush1.msra.mxu0 0.0
      %617 = vmatprep.subr.mxu0 0.0
      %618 = vmatpush1.msra.mxu0 0.0
      %619 = vmatprep.subr.mxu0 0.0
      %620 = vmatpush1.msra.mxu0 0.0
      %621 = vmatprep.subr.mxu0 0.0
      %622 = vmatpush1.msra.mxu0 0.0
      %623 = vmatprep.subr.mxu0 0.0
      %624 = vmatpush1.msra.mxu0 0.0
      %625 = vmatprep.subr.mxu0 0.0
      %626 = vmatpush1.msra.mxu0 0.0
      %627 = vmatprep.subr.mxu0 0.0
      %628 = vmatpush1.msra.mxu0 0.0
      %629 = vmatprep.subr.mxu0 0.0
      %630 = vmatpush1.msra.mxu0 0.0
      %631 = vmatprep.subr.mxu0 0.0
      %632 = vmatpush1.msra.mxu0 0.0
      %633 = vmatprep.mubr.f32.mxu0 0.0
      %634 = vmatmul.mubr.f32.gmra.mrb[0].mxu0 %v546
      %v635 = vpop.f32.mrb[0].mxu0
      %v636 = vadd.f32 %v544, %v635
      %v637 = vpop.f32.mrb[0].mxu0
      %638 = vmatprep.mubr.f32.mxu0 0.0
      %639 = vmatmul.mubr.f32.gmra.mrb[0].mxu0 %v549
      %v640 = vpop.f32.mrb[0].mxu0
      %v641 = vadd.f32 %v544, %v640
      %v642 = vpop.f32.mrb[0].mxu0
      %643 = vmatprep.mubr.f32.mxu0 0.0
      %644 = vmatmul.mubr.f32.gmra.mrb[0].mxu0 %v552
      %v645 = vpop.f32.mrb[0].mxu0
      %v646 = vadd.f32 %v544, %v645
      %v647 = vpop.f32.mrb[0].mxu0
      %648 = vmatprep.mubr.f32.mxu0 0.0
      %649 = vmatmul.mubr.f32.gmra.mrb[0].mxu0 %v555
      %v650 = vpop.f32.mrb[0].mxu0
      %v651 = vadd.f32 %v544, %v650
      %v652 = vpop.f32.mrb[0].mxu0
      %653 = vmatprep.mubr.f32.mxu0 0.0
      %654 = vmatmul.mubr.f32.gmra.mrb[0].mxu0 %v558
      %v655 = vpop.f32.mrb[0].mxu0
      %v656 = vadd.f32 %v544, %v655
      %v657 = vpop.f32.mrb[0].mxu0
      %658 = vmatprep.mubr.f32.mxu0 0.0
      %659 = vmatmul.mubr.f32.gmra.mrb[0].mxu0 %v561
      %v660 = vpop.f32.mrb[0].mxu0
      %v661 = vadd.f32 %v544, %v660
      %v662 = vpop.f32.mrb[0].mxu0
      %663 = vmatprep.mubr.f32.mxu0 0.0
      %664 = vmatmul.mubr.f32.gmra.mrb[0].mxu0 %v564
      %v665 = vpop.f32.mrb[0].mxu0
      %v666 = vadd.f32 %v544, %v665
      %v667 = vpop.f32.mrb[0].mxu0
      %668 = vmatprep.mubr.f32.mxu0 0.0
      %669 = vmatmul.mubr.f32.gmra.mrb[0].mxu0 %v567
      %v670 = vpop.f32.mrb[0].mxu0
      %v671 = vadd.f32 %v544, %v670
      %v672 = vpop.f32.mrb[0].mxu0
      %673 = vdwg.mxu0
      %v674 = vlaneseq
      %v675 = vand.u32 %v674, 127
      %v676 = vtanh.pop %v636
      %v677 = vtanh.pop %v641
      %v678 = vtanh.pop %v646
      %v679 = vtanh.pop %v651
      %v680 = vtanh.pop %v656
      %v681 = vtanh.pop %v661
      %v682 = vtanh.pop %v666
      %v683 = vtanh.pop %v671
      %v684 = vmul.f32 %v676, 2.0
      %v685 = vmul.f32 %v677, 2.0
      %v686 = vmul.f32 %v678, 2.0
      %v687 = vmul.f32 %v679, 2.0
      %v688 = vmul.f32 %v680, 2.0
      %v689 = vmul.f32 %v681, 2.0
      %v690 = vmul.f32 %v682, 2.0
      %v691 = vmul.f32 %v683, 2.0
      %v692 = vmax.f32 %v636, 0.0
      %v693 = vmax.f32 %v641, 0.0
      %v694 = vmax.f32 %v646, 0.0
      %v695 = vmax.f32 %v651, 0.0
      %v696 = vmax.f32 %v656, 0.0
      %v697 = vmax.f32 %v661, 0.0
      %v698 = vmax.f32 %v666, 0.0
      %v699 = vmax.f32 %v671, 0.0
      %v700 = vand.u32 2147483647, %v636
      %v701 = vand.u32 2147483647, %v641
      %v702 = vand.u32 2147483647, %v646
      %v703 = vand.u32 2147483647, %v651
      %v704 = vand.u32 2147483647, %v656
      %v705 = vand.u32 2147483647, %v661
      %v706 = vand.u32 2147483647, %v666
      %v707 = vand.u32 2147483647, %v671
      %v708 = vsub.f32 0.0, %v700
      %v709 = vsub.f32 0.0, %v701
      %v710 = vsub.f32 0.0, %v702
      %v711 = vsub.f32 0.0, %v703
      %v712 = vsub.f32 0.0, %v704
      %v713 = vsub.f32 0.0, %v705
      %v714 = vsub.f32 0.0, %v706
      %v715 = vsub.f32 0.0, %v707
      %v716 = vmul.f32 %v708, 1.442695
      %v717 = vpow.pop %v716
      %v718 = vmul.f32 %v709, 1.442695
      %v719 = vpow.pop %v718
      %v720 = vmul.f32 %v710, 1.442695
      %v721 = vpow.pop %v720
      %v722 = vmul.f32 %v711, 1.442695
      %v723 = vpow.pop %v722
      %v724 = vmul.f32 %v712, 1.442695
      %v725 = vpow.pop %v724
      %v726 = vmul.f32 %v713, 1.442695
      %v727 = vpow.pop %v726
      %v728 = vmul.f32 %v714, 1.442695
      %v729 = vpow.pop %v728
      %v730 = vmul.f32 %v715, 1.442695
      %v731 = vpow.pop %v730
      %v732 = vadd.f32 %v717, 1.0
      %v733 = vlog2.pop %v732
      %v734 = vmul.f32 %v733, 0.6931472
      %v735 = vmul.f32 -0.5, %v717
      %v736 = vadd.f32 %v735, 1.0
      %v737 = vmul.f32 %v736, %v717
      %v738 = vand.u32 2147483647, %v717
      %vm739 = vcmp.lt.f32.partialorder %v738, 0.0004427343
      %v740 = vsel %vm739, %v737, %v734
      %v741 = vadd.f32 %v719, 1.0
      %v742 = vlog2.pop %v741
      %v743 = vmul.f32 %v742, 0.6931472
      %v744 = vmul.f32 -0.5, %v719
      %v745 = vadd.f32 %v744, 1.0
      %v746 = vmul.f32 %v745, %v719
      %v747 = vand.u32 2147483647, %v719
      %vm748 = vcmp.lt.f32.partialorder %v747, 0.0004427343
      %v749 = vsel %vm748, %v746, %v743
      %v750 = vadd.f32 %v721, 1.0
      %v751 = vlog2.pop %v750
      %v752 = vmul.f32 %v751, 0.6931472
      %v753 = vmul.f32 -0.5, %v721
      %v754 = vadd.f32 %v753, 1.0
      %v755 = vmul.f32 %v754, %v721
      %v756 = vand.u32 2147483647, %v721
      %vm757 = vcmp.lt.f32.partialorder %v756, 0.0004427343
      %v758 = vsel %vm757, %v755, %v752
      %v759 = vadd.f32 %v723, 1.0
      %v760 = vlog2.pop %v759
      %v761 = vmul.f32 %v760, 0.6931472
      %v762 = vmul.f32 -0.5, %v723
      %v763 = vadd.f32 %v762, 1.0
      %v764 = vmul.f32 %v763, %v723
      %v765 = vand.u32 2147483647, %v723
      %vm766 = vcmp.lt.f32.partialorder %v765, 0.0004427343
      %v767 = vsel %vm766, %v764, %v761
      %v768 = vadd.f32 %v725, 1.0
      %v769 = vlog2.pop %v768
      %v770 = vmul.f32 %v769, 0.6931472
      %v771 = vmul.f32 -0.5, %v725
      %v772 = vadd.f32 %v771, 1.0
      %v773 = vmul.f32 %v772, %v725
      %v774 = vand.u32 2147483647, %v725
      %vm775 = vcmp.lt.f32.partialorder %v774, 0.0004427343
      %v776 = vsel %vm775, %v773, %v770
      %v777 = vadd.f32 %v727, 1.0
      %v778 = vlog2.pop %v777
      %v779 = vmul.f32 %v778, 0.6931472
      %v780 = vmul.f32 -0.5, %v727
      %v781 = vadd.f32 %v780, 1.0
      %v782 = vmul.f32 %v781, %v727
      %v783 = vand.u32 2147483647, %v727
      %vm784 = vcmp.lt.f32.partialorder %v783, 0.0004427343
      %v785 = vsel %vm784, %v782, %v779
      %v786 = vadd.f32 %v729, 1.0
      %v787 = vlog2.pop %v786
      %v788 = vmul.f32 %v787, 0.6931472
      %v789 = vmul.f32 -0.5, %v729
      %v790 = vadd.f32 %v789, 1.0
      %v791 = vmul.f32 %v790, %v729
      %v792 = vand.u32 2147483647, %v729
      %vm793 = vcmp.lt.f32.partialorder %v792, 0.0004427343
      %v794 = vsel %vm793, %v791, %v788
      %v795 = vadd.f32 %v731, 1.0
      %v796 = vlog2.pop %v795
      %v797 = vmul.f32 %v796, 0.6931472
      %v798 = vmul.f32 -0.5, %v731
      %v799 = vadd.f32 %v798, 1.0
      %v800 = vmul.f32 %v799, %v731
      %v801 = vand.u32 2147483647, %v731
      %vm802 = vcmp.lt.f32.partialorder %v801, 0.0004427343
      %v803 = vsel %vm802, %v800, %v797
      %v804 = vadd.f32 %v692, %v740
      %v805 = vadd.f32 %v693, %v749
      %v806 = vadd.f32 %v694, %v758
      %v807 = vadd.f32 %v695, %v767
      %v808 = vadd.f32 %v696, %v776
      %v809 = vadd.f32 %v697, %v785
      %v810 = vadd.f32 %v698, %v794
      %v811 = vadd.f32 %v699, %v803
      %vm812 = vcmp.lt.s32.totalorder %v675, 8
      %v813 = vadd.f32 %v804, 1e-05
      %v814 = vadd.f32 %v805, 1e-05
      %v815 = vadd.f32 %v806, 1e-05
      %v816 = vadd.f32 %v807, 1e-05
      %v817 = vadd.f32 %v808, 1e-05
      %v818 = vadd.f32 %v809, 1e-05
      %v819 = vadd.f32 %v810, 1e-05
      %v820 = vadd.f32 %v811, 1e-05
      %v821 = vsel %vm812, %v684, %v813
      %v822 = vsel %vm812, %v685, %v814
      %v823 = vsel %vm812, %v686, %v815
      %v824 = vsel %vm812, %v687, %v816
      %v825 = vsel %vm812, %v688, %v817
      %v826 = vsel %vm812, %v689, %v818
      %v827 = vsel %vm812, %v690, %v819
      %v828 = vsel %vm812, %v691, %v820
      %829 = vst.msk [vmem:[%s226] sm:$0xff] %vm245, %v821
      %830 = vst.msk [vmem:[%s226 + $0x8] sm:$0xff] %vm245, %v822
      %831 = vst.msk [vmem:[%s226 + $0x10] sm:$0xff] %vm245, %v823
      %832 = vst.msk [vmem:[%s226 + $0x18] sm:$0xff] %vm245, %v824
      %833 = vst.msk [vmem:[%s226 + $0x20] sm:$0xff] %vm245, %v825
      %834 = vst.msk [vmem:[%s226 + $0x28] sm:$0xff] %vm245, %v826
      %835 = vst.msk [vmem:[%s226 + $0x30] sm:$0xff] %vm245, %v827
      %836 = vst.msk [vmem:[%s226 + $0x38] sm:$0xff] %vm245, %v828
      %s837 = smul.u32 8, %s16
      %p838 = scmp.lt.s32.totalorder %s837, 31
      %s839 = scalar_select %p838, %s837, 31
      %s840 = smul.addr %s839, 8
      %s841 = scalar_lea.vmem %s5, %s840
      // Predicated region
      $region41: #{tpu_custom_call.1} parent=39 // pred_check
        %p842 = pneg %p144
      $region42: #{tpu_custom_call.1} parent=39 // pred_check_branch
        %844 = sbr.rel (%p842) target = $region44
      $region43: #{tpu_custom_call.1} parent=39 // pred_region
        %s845 = smul.u32 8, %s16
      $region44: #{tpu_custom_call.1} parent=39 // pred_fallthru
        _
    $region40: #{tpu_custom_call.1} parent=5 // pred_fallthru
      _
    %p846 = scmp.le.s32.totalorder 2, %s11
    // Predicated region
    $region45: #{tpu_custom_call.1} parent=5 // pred_check
      %p847 = pneg %p846
    $region46: #{tpu_custom_call.1} parent=5 // pred_check_branch
      %849 = sbr.rel (%p847) target = $region48
    $region47: #{tpu_custom_call.1} parent=5 // pred_region
      %s850 = ssub.s32 %s11, 2
      // Predicated region
      $region49: #{tpu_custom_call.1} parent=47 // pred_check
        %p851 = pneg %p150
      $region50: #{tpu_custom_call.1} parent=47 // pred_check_branch
        %853 = sbr.rel (%p851) target = $region52
      $region51: #{tpu_custom_call.1} parent=47 // pred_region
        %s854 = smul.u32 8, %s17
        %p855 = scmp.lt.s32.totalorder %s854, 31
        %s856 = scalar_select %p855, %s854, 31
        %s857 = smul.addr %s856, 8
        %s858 = scalar_lea.vmem %s5, %s857
      $region52: #{tpu_custom_call.1} parent=47 // pred_fallthru
        _
    $region48: #{tpu_custom_call.1} parent=5 // pred_fallthru
      _
  $region6: #{tpu_custom_call.1} parent=0 // loop_footer
    %s15 = sadd.s32 1, %s11
  $region7: #{tpu_custom_call.1} parent=0 // loop_footer_branch
    %10 = sbr.rel target = $region3
  $region8: #{tpu_custom_call.1} parent=0 // loop_exit
    _

</llo_original>
